<compile_context>
chip_gen: v6e
topology: v6e:2x2x1
jax: 0.10.0
libtpu: 0.0.40
codegen_flags: <defaults>
</compile_context>

<pallas_src>
import functools
import math

import jax
import jax.numpy as jnp
from jax.experimental import pallas as pl
from jax.experimental.pallas import tpu as pltpu


def _round_up(v, m):
    return ((v + m - 1) // m) * m


def _cdiv(a, b):
    return -(-a // b)


# ----------------------------------------------------------------------------
# Parameter construction (plain-JAX glue; deterministic).
# ----------------------------------------------------------------------------
def _scale_noise(key, size):
    x = jax.random.normal(key, (size,), dtype=jnp.float32)
    return jnp.sign(x) * jnp.sqrt(jnp.abs(x))


def make_noisy_linear(key, in_features, out_features, std_init):
    """Effective (training-mode) weight/bias of a NoisyLinear, stored as
    (in, out) / (1, out) so the kernel computes x @ W + b."""
    k_wmu, k_bmu, k_ein, k_eout = jax.random.split(key, 4)
    mu_range = 1.0 / math.sqrt(in_features)

    weight_mu = jax.random.uniform(
        k_wmu, (out_features, in_features), dtype=jnp.float32,
        minval=-mu_range, maxval=mu_range)
    weight_sigma = jnp.full((out_features, in_features),
                            std_init / math.sqrt(in_features), jnp.float32)
    bias_mu = jax.random.uniform(
        k_bmu, (out_features,), dtype=jnp.float32,
        minval=-mu_range, maxval=mu_range)
    bias_sigma = jnp.full((out_features,),
                          std_init / math.sqrt(out_features), jnp.float32)

    eps_in = _scale_noise(k_ein, in_features)
    eps_out = _scale_noise(k_eout, out_features)
    weight_eps = jnp.outer(eps_out, eps_in)

    w = weight_mu + weight_sigma * weight_eps          # (out, in)
    b = bias_mu + bias_sigma * eps_out                 # (out,)
    return w.T, b[None, :]                             # (in, out), (1, out)


# ----------------------------------------------------------------------------
# Wrapper-side weight packing.  Called ONCE per noise resample (hoisted out of
# the per-forward wrapper); the packed tuple is reused across forward calls.
# ----------------------------------------------------------------------------
def pack_rainbow_params(params, *, action_space, atoms,
                        matmul_dtype=jnp.bfloat16):
    assert jnp.dtype(matmul_dtype) in (jnp.dtype(jnp.float32),
                                       jnp.dtype(jnp.bfloat16)), (
        "matmul_dtype must be f32 or bf16 (padded W2 columns must stay exactly "
        "zero and the -1e30 bias sentinel must remain representable)")

    (w_hv, b_hv), (w_ha, b_ha), (w_zv, b_zv), (w_za, b_za) = params
    c_in, hidden = w_hv.shape
    atoms_pad = _round_up(atoms, 128)
    pad = atoms_pad - atoms

    # Layer 1: fuse value + advantage hidden matmuls.
    w1 = jnp.concatenate([w_hv, w_ha], axis=1)          # (c_in, 2H)
    b1 = jnp.concatenate([b_hv, b_ha], axis=1)          # (1, 2H)

    # Layer 2: fold the dueling combine into the weights.
    w_za3 = w_za.reshape(hidden, action_space, atoms)
    w_za_mean = jnp.mean(w_za3, axis=1)                 # (H, atoms)
    b_za2 = b_za.reshape(action_space, atoms)
    b_za_mean = jnp.mean(b_za2, axis=0)                 # (atoms,)

    w_blocks, b_blocks = [], []
    for j in range(action_space):
        wj = jnp.concatenate([w_zv, w_za3[:, j, :] - w_za_mean], axis=0)
        wj = jnp.pad(wj, ((0, 0), (0, pad)))                          # (2H, 128)
        bj = (b_zv[0] + b_za2[j] - b_za_mean)[None, :]
        bj = jnp.pad(bj, ((0, 0), (0, pad)), constant_values=-1e30)   # (1, 128)
        w_blocks.append(wj)
        b_blocks.append(bj)
    w2 = jnp.concatenate(w_blocks, axis=1)               # (2H, A*128)
    b2 = jnp.concatenate(b_blocks, axis=1)               # (1, A*128)

    # Biases stay f32 (bias add / ReLU / softmax in f32; -1e30 sentinel safe).
    w1 = w1.astype(matmul_dtype)
    w2 = w2.astype(matmul_dtype)
    assert b1.dtype == jnp.float32 and b2.dtype == jnp.float32

    packed = {
        "w1": w1, "b1": b1, "w2": w2, "b2": b2,
        "c_in": c_in, "action_space": action_space,
        "atoms": atoms, "atoms_pad": atoms_pad,
    }
    return packed


# ----------------------------------------------------------------------------
# Pallas kernel: 2 fused matmuls + per-action softmax with direct lane-aligned
# stores into the output ref.
# ----------------------------------------------------------------------------
def rainbow_kernel(x_ref, w1_ref, b1_ref, w2_ref, b2_ref, q_ref,
                   *, action_space, atoms_pad):
    x = x_ref[...]                                                  # (TB, C)

    # Fused hidden layer: h = relu(x @ [W_hv|W_ha] + [b_hv|b_ha])   (TB, 2H)
    h = jnp.maximum(
        jnp.dot(x, w1_ref[...], preferred_element_type=jnp.float32)
        + b1_ref[...], 0.0)

    # Fused output layer (dueling combine pre-folded into W2/b2)    (TB, A*128)
    z = (jnp.dot(h.astype(w2_ref.dtype), w2_ref[...],
                 preferred_element_type=jnp.float32) + b2_ref[...])

    # Per-action softmax over 128-lane-aligned atom blocks; padded columns
    # carry a -1e30 bias so exp() of them is exactly 0.  Each block is stored
    # directly (full-width unmasked vst; no concat / second copy).
    for j in range(action_space):
        zj = z[:, j * atoms_pad:(j + 1) * atoms_pad]
        m = jnp.max(zj, axis=-1, keepdims=True)
        e = jnp.exp(zj - m)
        inv = pl.reciprocal(jnp.sum(e, axis=-1, keepdims=True), approx=True)
        q_ref[:, j * atoms_pad:(j + 1) * atoms_pad] = (e * inv).astype(q_ref.dtype)


# ----------------------------------------------------------------------------
# Forward wrapper (takes pre-packed weights)
# ----------------------------------------------------------------------------
def rainbow_dense_block(x, packed, *, tile_b=1024,
                        out_dtype=jnp.bfloat16, keep_padded=False):
    w1, b1, w2, b2 = packed["w1"], packed["b1"], packed["w2"], packed["b2"]
    c_in = packed["c_in"]
    action_space = packed["action_space"]
    atoms = packed["atoms"]
    atoms_pad = packed["atoms_pad"]
    two_h = w1.shape[1]
    n_out = action_space * atoms_pad

    x2d = x.reshape(-1, c_in).astype(w1.dtype)           # torch x.view(-1, c_in)
    B = x2d.shape[0]

    # Batch tiling: big tiles (amortize ~0.35us/step), but force >=2 grid steps
    # whenever B > 8 so v7x's 2 TensorCores both get work ("parallel" axis).
    tile_b = max(8, _round_up(tile_b, 8))
    n_steps = max(1, _cdiv(B, tile_b))
    if B > 8 and n_steps < 2:
        n_steps = 2
    tb = _round_up(_cdiv(B, n_steps), 8)
    Bp = tb * n_steps
    if Bp != B:
        x2d = jnp.pad(x2d, ((0, Bp - B), (0, 0)))

    kernel = functools.partial(rainbow_kernel,
                               action_space=action_space, atoms_pad=atoms_pad)

    q_pad = pl.pallas_call(
        kernel,
        out_shape=jax.ShapeDtypeStruct((Bp, n_out), out_dtype),
        grid_spec=pltpu.PrefetchScalarGridSpec(
            num_scalar_prefetch=0,
            grid=(n_steps,),
            in_specs=[
                pl.BlockSpec((tb, c_in), lambda i: (i, 0)),      # x (tiled)
                pl.BlockSpec((c_in, two_h), lambda i: (0, 0)),   # W1 (resident)
                pl.BlockSpec((1, two_h), lambda i: (0, 0)),      # b1
                pl.BlockSpec((two_h, n_out), lambda i: (0, 0)),  # W2 (resident)
                pl.BlockSpec((1, n_out), lambda i: (0, 0)),      # b2
            ],
            out_specs=pl.BlockSpec((tb, n_out), lambda i: (i, 0)),
        ),
        compiler_params=pltpu.CompilerParams(
            dimension_semantics=("parallel",)),
    )(x2d, w1, b1, w2, b2)

    q3 = q_pad.reshape(Bp, action_space, atoms_pad)
    if keep_padded:
        # Lane-dense padded layout for consumers that fold the un-pad
        # themselves (avoids an extra full read+write pass over the output).
        return q3
    return q3[:B, :, :atoms]                              # torch layout (B, A, atoms)


# ----------------------------------------------------------------------------
# Pure-JAX reference (for correctness check)
# ----------------------------------------------------------------------------
def reference(x, params, *, c_in, action_space, atoms):
    x2d = x.reshape(-1, c_in).astype(jnp.float32)
    (w_hv, b_hv), (w_ha, b_ha), (w_zv, b_zv), (w_za, b_za) = params
    h_v = jax.nn.relu(x2d @ w_hv + b_hv)
    h_a = jax.nn.relu(x2d @ w_ha + b_ha)
    v = (h_v @ w_zv + b_zv).reshape(-1, 1, atoms)
    a = (h_a @ w_za + b_za).reshape(-1, action_space, atoms)
    q = v + a - a.mean(axis=1, keepdims=True)
    return jax.nn.softmax(q, axis=2)


if __name__ == "__main__":
    c_in = 64
    hidden_size = 128
    atoms = 51
    action_space = 6
    noisy_std = 0.1

    key = jax.random.PRNGKey(0)
    kx, kx2, k1, k2, k3, k4 = jax.random.split(key, 6)

    params = (
        make_noisy_linear(k1, c_in, hidden_size, noisy_std),                  # fc_h_v
        make_noisy_linear(k2, c_in, hidden_size, noisy_std),                  # fc_h_a
        make_noisy_linear(k3, hidden_size, atoms, noisy_std),                 # fc_z_v
        make_noisy_linear(k4, hidden_size, action_space * atoms, noisy_std),  # fc_z_a
    )

    # Pack once per noise resample (hoisted out of the forward call).
    packed_bf16 = pack_rainbow_params(params, action_space=action_space,
                                      atoms=atoms, matmul_dtype=jnp.bfloat16)
    packed_f32 = pack_rainbow_params(params, action_space=action_space,
                                     atoms=atoms, matmul_dtype=jnp.float32)

    # --- tiny-batch check (single grid step), full-f32 path, tight tolerance ---
    x = jax.random.normal(kx, (2, 4, 4, 4), dtype=jnp.float32)  # -> (2, 64)
    q = jax.block_until_ready(
        rainbow_dense_block(x, packed_f32, out_dtype=jnp.float32))
    q_ref = reference(x, params, c_in=c_in,
                      action_space=action_space, atoms=atoms)
    assert q.shape == (2, action_space, atoms)
    assert jnp.allclose(q, q_ref, atol=2e-3, rtol=2e-3), "tiny-batch mismatch"

    # --- multi-tile batch check, default bf16 MXU + bf16 output fast path ---
    # (B=300 -> forced to 2 grid steps of 152 rows: exercises the 'parallel'
    #  batch grid / v7x megacore path.)
    xb = jax.random.normal(kx2, (300, 4, 4, 4), dtype=jnp.float32)  # -> (300, 64)
    qb = jax.block_until_ready(rainbow_dense_block(xb, packed_bf16))
    qb_ref = reference(xb, params, c_in=c_in,
                       action_space=action_space, atoms=atoms)
    assert qb.shape == (300, action_space, atoms)
    assert qb.dtype == jnp.bfloat16
    assert jnp.allclose(qb.astype(jnp.float32), qb_ref,
                        atol=5e-2, rtol=5e-2), "tiled-batch bf16 mismatch"

    # --- padded lane-dense output path (no wrapper un-pad slice pass) ---
    qp = jax.block_until_ready(
        rainbow_dense_block(xb, packed_bf16, keep_padded=True))
    assert qp.shape[1] == action_space and qp.shape[2] % 128 == 0
    assert jnp.allclose(qp[:300, :, :atoms].astype(jnp.float32), qb_ref,
                        atol=5e-2, rtol=5e-2), "padded-output mismatch"

    print("KERNEL_OK")
</pallas_src>

<mosaic_0001>
module attributes {stable_mosaic.version = 11 : i64} {
  func.func @rainbow_kernel(%arg0: i32, %arg1: memref<8x64xf32, #tpu.memory_space<vmem>>, %arg2: memref<64x256xf32, #tpu.memory_space<vmem>>, %arg3: memref<1x256xf32, #tpu.memory_space<vmem>>, %arg4: memref<256x768xf32, #tpu.memory_space<vmem>>, %arg5: memref<1x768xf32, #tpu.memory_space<vmem>>, %arg6: memref<8x768xf32, #tpu.memory_space<vmem>>) attributes {dimension_semantics = [#tpu.dimension_semantics<parallel>], iteration_bounds = array<i64: 1>, scalar_prefetch = 0 : i64, scratch_operands = 0 : i64, tpu.core_type = #tpu.core_type<tc>, window_params = [{transform_indices = @transform_0, window_bounds = array<i64: 8, 64>}, {pipeline_mode = #tpu.pipeline_mode<synchronous>, transform_indices = @transform_1, window_bounds = array<i64: 64, 256>}, {pipeline_mode = #tpu.pipeline_mode<synchronous>, transform_indices = @transform_2, window_bounds = array<i64: 1, 256>}, {pipeline_mode = #tpu.pipeline_mode<synchronous>, transform_indices = @transform_3, window_bounds = array<i64: 256, 768>}, {pipeline_mode = #tpu.pipeline_mode<synchronous>, transform_indices = @transform_4, window_bounds = array<i64: 1, 768>}, {transform_indices = @transform_5, window_bounds = array<i64: 8, 768>}]} {
    %c0 = arith.constant 0 : index
    %c0_0 = arith.constant 0 : index
    %0 = vector.load %arg1[%c0, %c0_0] : memref<8x64xf32, #tpu.memory_space<vmem>>, vector<8x64xf32>
    %c0_1 = arith.constant 0 : index
    %c0_2 = arith.constant 0 : index
    %1 = vector.load %arg2[%c0_1, %c0_2] : memref<64x256xf32, #tpu.memory_space<vmem>>, vector<64x256xf32>
    %cst = arith.constant dense<0.000000e+00> : vector<8x256xf32>
    %2 = tpu.matmul %0, %1, %cst {dimension_numbers = #tpu.dot_dimension_numbers<[1], [0], [0], [1], [0, 0, 1, 1], [], []>} : vector<8x64xf32>, vector<64x256xf32>, vector<8x256xf32> -> vector<8x256xf32>
    %c0_3 = arith.constant 0 : index
    %c0_4 = arith.constant 0 : index
    %3 = vector.load %arg3[%c0_3, %c0_4] : memref<1x256xf32, #tpu.memory_space<vmem>>, vector<1x256xf32>
    %4 = vector.broadcast %3 : vector<1x256xf32> to vector<8x256xf32>
    %5 = arith.addf %2, %4 : vector<8x256xf32>
    %cst_5 = arith.constant 0.000000e+00 : f32
    %6 = vector.broadcast %cst_5 : f32 to vector<8x256xf32>
    %7 = arith.maximumf %5, %6 : vector<8x256xf32>
    %c0_6 = arith.constant 0 : index
    %c0_7 = arith.constant 0 : index
    %8 = vector.load %arg4[%c0_6, %c0_7] : memref<256x768xf32, #tpu.memory_space<vmem>>, vector<256x768xf32>
    %cst_8 = arith.constant dense<0.000000e+00> : vector<8x768xf32>
    %9 = tpu.matmul %7, %8, %cst_8 {dimension_numbers = #tpu.dot_dimension_numbers<[1], [0], [0], [1], [0, 0, 1, 1], [], []>} : vector<8x256xf32>, vector<256x768xf32>, vector<8x768xf32> -> vector<8x768xf32>
    %c0_9 = arith.constant 0 : index
    %c0_10 = arith.constant 0 : index
    %10 = vector.load %arg5[%c0_9, %c0_10] : memref<1x768xf32, #tpu.memory_space<vmem>>, vector<1x768xf32>
    %11 = vector.broadcast %10 : vector<1x768xf32> to vector<8x768xf32>
    %12 = arith.addf %9, %11 : vector<8x768xf32>
    %13 = vector.extract_strided_slice %12 {offsets = [0, 0], sizes = [8, 128], strides = [1, 1]} : vector<8x768xf32> to vector<8x128xf32>
    %cst_11 = arith.constant dense<0xFF800000> : vector<8xf32>
    %14 = vector.multi_reduction <maximumf>, %13, %cst_11 [1] : vector<8x128xf32> to vector<8xf32>
    %15 = vector.shape_cast %14 : vector<8xf32> to vector<8x1xf32>
    %16 = vector.broadcast %15 : vector<8x1xf32> to vector<8x128xf32>
    %17 = arith.subf %13, %16 : vector<8x128xf32>
    %18 = math.exp %17 : vector<8x128xf32>
    %cst_12 = arith.constant dense<0.000000e+00> : vector<8xf32>
    %19 = vector.multi_reduction <add>, %18, %cst_12 [1] : vector<8x128xf32> to vector<8xf32>
    %20 = vector.shape_cast %19 : vector<8xf32> to vector<8x1xf32>
    %21 = tpu.reciprocal %20 {approx = true} : vector<8x1xf32> -> vector<8x1xf32>
    %22 = vector.broadcast %21 : vector<8x1xf32> to vector<8x128xf32>
    %23 = arith.mulf %18, %22 : vector<8x128xf32>
    %c0_13 = arith.constant 0 : index
    %c0_14 = arith.constant 0 : index
    %24 = vector.load %arg6[%c0_13, %c0_14] : memref<8x768xf32, #tpu.memory_space<vmem>>, vector<8x128xf32>
    tpu.vector_store %arg6[%c0_13, %c0_14], %23 {strides = array<i32>} : memref<8x768xf32, #tpu.memory_space<vmem>>, vector<8x128xf32>,
    %25 = vector.extract_strided_slice %12 {offsets = [0, 128], sizes = [8, 128], strides = [1, 1]} : vector<8x768xf32> to vector<8x128xf32>
    %cst_15 = arith.constant dense<0xFF800000> : vector<8xf32>
    %26 = vector.multi_reduction <maximumf>, %25, %cst_15 [1] : vector<8x128xf32> to vector<8xf32>
    %27 = vector.shape_cast %26 : vector<8xf32> to vector<8x1xf32>
    %28 = vector.broadcast %27 : vector<8x1xf32> to vector<8x128xf32>
    %29 = arith.subf %25, %28 : vector<8x128xf32>
    %30 = math.exp %29 : vector<8x128xf32>
    %cst_16 = arith.constant dense<0.000000e+00> : vector<8xf32>
    %31 = vector.multi_reduction <add>, %30, %cst_16 [1] : vector<8x128xf32> to vector<8xf32>
    %32 = vector.shape_cast %31 : vector<8xf32> to vector<8x1xf32>
    %33 = tpu.reciprocal %32 {approx = true} : vector<8x1xf32> -> vector<8x1xf32>
    %34 = vector.broadcast %33 : vector<8x1xf32> to vector<8x128xf32>
    %35 = arith.mulf %30, %34 : vector<8x128xf32>
    %c0_17 = arith.constant 0 : index
    %c128 = arith.constant 128 : index
    %36 = vector.load %arg6[%c0_17, %c128] : memref<8x768xf32, #tpu.memory_space<vmem>>, vector<8x128xf32>
    tpu.vector_store %arg6[%c0_17, %c128], %35 {strides = array<i32>} : memref<8x768xf32, #tpu.memory_space<vmem>>, vector<8x128xf32>,
    %37 = vector.extract_strided_slice %12 {offsets = [0, 256], sizes = [8, 128], strides = [1, 1]} : vector<8x768xf32> to vector<8x128xf32>
    %cst_18 = arith.constant dense<0xFF800000> : vector<8xf32>
    %38 = vector.multi_reduction <maximumf>, %37, %cst_18 [1] : vector<8x128xf32> to vector<8xf32>
    %39 = vector.shape_cast %38 : vector<8xf32> to vector<8x1xf32>
    %40 = vector.broadcast %39 : vector<8x1xf32> to vector<8x128xf32>
    %41 = arith.subf %37, %40 : vector<8x128xf32>
    %42 = math.exp %41 : vector<8x128xf32>
    %cst_19 = arith.constant dense<0.000000e+00> : vector<8xf32>
    %43 = vector.multi_reduction <add>, %42, %cst_19 [1] : vector<8x128xf32> to vector<8xf32>
    %44 = vector.shape_cast %43 : vector<8xf32> to vector<8x1xf32>
    %45 = tpu.reciprocal %44 {approx = true} : vector<8x1xf32> -> vector<8x1xf32>
    %46 = vector.broadcast %45 : vector<8x1xf32> to vector<8x128xf32>
    %47 = arith.mulf %42, %46 : vector<8x128xf32>
    %c0_20 = arith.constant 0 : index
    %c256 = arith.constant 256 : index
    %48 = vector.load %arg6[%c0_20, %c256] : memref<8x768xf32, #tpu.memory_space<vmem>>, vector<8x128xf32>
    tpu.vector_store %arg6[%c0_20, %c256], %47 {strides = array<i32>} : memref<8x768xf32, #tpu.memory_space<vmem>>, vector<8x128xf32>,
    %49 = vector.extract_strided_slice %12 {offsets = [0, 384], sizes = [8, 128], strides = [1, 1]} : vector<8x768xf32> to vector<8x128xf32>
    %cst_21 = arith.constant dense<0xFF800000> : vector<8xf32>
    %50 = vector.multi_reduction <maximumf>, %49, %cst_21 [1] : vector<8x128xf32> to vector<8xf32>
    %51 = vector.shape_cast %50 : vector<8xf32> to vector<8x1xf32>
    %52 = vector.broadcast %51 : vector<8x1xf32> to vector<8x128xf32>
    %53 = arith.subf %49, %52 : vector<8x128xf32>
    %54 = math.exp %53 : vector<8x128xf32>
    %cst_22 = arith.constant dense<0.000000e+00> : vector<8xf32>
    %55 = vector.multi_reduction <add>, %54, %cst_22 [1] : vector<8x128xf32> to vector<8xf32>
    %56 = vector.shape_cast %55 : vector<8xf32> to vector<8x1xf32>
    %57 = tpu.reciprocal %56 {approx = true} : vector<8x1xf32> -> vector<8x1xf32>
    %58 = vector.broadcast %57 : vector<8x1xf32> to vector<8x128xf32>
    %59 = arith.mulf %54, %58 : vector<8x128xf32>
    %c0_23 = arith.constant 0 : index
    %c384 = arith.constant 384 : index
    %60 = vector.load %arg6[%c0_23, %c384] : memref<8x768xf32, #tpu.memory_space<vmem>>, vector<8x128xf32>
    tpu.vector_store %arg6[%c0_23, %c384], %59 {strides = array<i32>} : memref<8x768xf32, #tpu.memory_space<vmem>>, vector<8x128xf32>,
    %61 = vector.extract_strided_slice %12 {offsets = [0, 512], sizes = [8, 128], strides = [1, 1]} : vector<8x768xf32> to vector<8x128xf32>
    %cst_24 = arith.constant dense<0xFF800000> : vector<8xf32>
    %62 = vector.multi_reduction <maximumf>, %61, %cst_24 [1] : vector<8x128xf32> to vector<8xf32>
    %63 = vector.shape_cast %62 : vector<8xf32> to vector<8x1xf32>
    %64 = vector.broadcast %63 : vector<8x1xf32> to vector<8x128xf32>
    %65 = arith.subf %61, %64 : vector<8x128xf32>
    %66 = math.exp %65 : vector<8x128xf32>
    %cst_25 = arith.constant dense<0.000000e+00> : vector<8xf32>
    %67 = vector.multi_reduction <add>, %66, %cst_25 [1] : vector<8x128xf32> to vector<8xf32>
    %68 = vector.shape_cast %67 : vector<8xf32> to vector<8x1xf32>
    %69 = tpu.reciprocal %68 {approx = true} : vector<8x1xf32> -> vector<8x1xf32>
    %70 = vector.broadcast %69 : vector<8x1xf32> to vector<8x128xf32>
    %71 = arith.mulf %66, %70 : vector<8x128xf32>
    %c0_26 = arith.constant 0 : index
    %c512 = arith.constant 512 : index
    %72 = vector.load %arg6[%c0_26, %c512] : memref<8x768xf32, #tpu.memory_space<vmem>>, vector<8x128xf32>
    tpu.vector_store %arg6[%c0_26, %c512], %71 {strides = array<i32>} : memref<8x768xf32, #tpu.memory_space<vmem>>, vector<8x128xf32>,
    %73 = vector.extract_strided_slice %12 {offsets = [0, 640], sizes = [8, 128], strides = [1, 1]} : vector<8x768xf32> to vector<8x128xf32>
    %cst_27 = arith.constant dense<0xFF800000> : vector<8xf32>
    %74 = vector.multi_reduction <maximumf>, %73, %cst_27 [1] : vector<8x128xf32> to vector<8xf32>
    %75 = vector.shape_cast %74 : vector<8xf32> to vector<8x1xf32>
    %76 = vector.broadcast %75 : vector<8x1xf32> to vector<8x128xf32>
    %77 = arith.subf %73, %76 : vector<8x128xf32>
    %78 = math.exp %77 : vector<8x128xf32>
    %cst_28 = arith.constant dense<0.000000e+00> : vector<8xf32>
    %79 = vector.multi_reduction <add>, %78, %cst_28 [1] : vector<8x128xf32> to vector<8xf32>
    %80 = vector.shape_cast %79 : vector<8xf32> to vector<8x1xf32>
    %81 = tpu.reciprocal %80 {approx = true} : vector<8x1xf32> -> vector<8x1xf32>
    %82 = vector.broadcast %81 : vector<8x1xf32> to vector<8x128xf32>
    %83 = arith.mulf %78, %82 : vector<8x128xf32>
    %c0_29 = arith.constant 0 : index
    %c640 = arith.constant 640 : index
    %84 = vector.load %arg6[%c0_29, %c640] : memref<8x768xf32, #tpu.memory_space<vmem>>, vector<8x128xf32>
    tpu.vector_store %arg6[%c0_29, %c640], %83 {strides = array<i32>} : memref<8x768xf32, #tpu.memory_space<vmem>>, vector<8x128xf32>,
    return
  }
  func.func @transform_0(%arg0: i32) -> (i32, i32) {
    %c0_i32 = arith.constant 0 : i32
    %c0_i32_0 = arith.constant 0 : i32
    return %arg0, %c0_i32 : i32, i32
  }
  func.func @transform_1(%arg0: i32) -> (i32, i32) {
    %c0_i32 = arith.constant 0 : i32
    %c0_i32_0 = arith.constant 0 : i32
    %c0_i32_1 = arith.constant 0 : i32
    return %c0_i32, %c0_i32_0 : i32, i32
  }
  func.func @transform_2(%arg0: i32) -> (i32, i32) {
    %c0_i32 = arith.constant 0 : i32
    %c0_i32_0 = arith.constant 0 : i32
    %c0_i32_1 = arith.constant 0 : i32
    return %c0_i32, %c0_i32_0 : i32, i32
  }
  func.func @transform_3(%arg0: i32) -> (i32, i32) {
    %c0_i32 = arith.constant 0 : i32
    %c0_i32_0 = arith.constant 0 : i32
    %c0_i32_1 = arith.constant 0 : i32
    return %c0_i32, %c0_i32_0 : i32, i32
  }
  func.func @transform_4(%arg0: i32) -> (i32, i32) {
    %c0_i32 = arith.constant 0 : i32
    %c0_i32_0 = arith.constant 0 : i32
    %c0_i32_1 = arith.constant 0 : i32
    return %c0_i32, %c0_i32_0 : i32, i32
  }
  func.func @transform_5(%arg0: i32) -> (i32, i32) {
    %c0_i32 = arith.constant 0 : i32
    %c0_i32_0 = arith.constant 0 : i32
    return %arg0, %c0_i32 : i32, i32
  }
}

</mosaic_0001>

<llo_original>
// kernel: tpu_custom_call.1
$region0: #{tpu_custom_call.1}
  #allocation0 [shape = 'u32[]', space=smem, size = 0x4, offset = 0x4, fixed_abs, tag = 'smem constant byte address 0x4 - core index']
  #allocation1 [shape = 'u32[144,128]{1,0:T(1,128)}', space=vmem, size = 0x12000, scoped, tag = 'internal scratch']
  %s0 = inlined_call_operand.hbm [shape: f32[8,64], index: 0, kind: input, shape index: {}]
  %s1 = inlined_call_operand.hbm [shape: f32[64,256], index: 1, kind: input, shape index: {}]
  %s2 = inlined_call_operand.hbm [shape: f32[1,256], index: 2, kind: input, shape index: {}]
  %s3 = inlined_call_operand.hbm [shape: f32[256,768], index: 3, kind: input, shape index: {}]
  %s4 = inlined_call_operand.vmem [shape: f32[1,768], index: 4, kind: input, shape index: {}]
  %s5 = inlined_call_operand.hbm [shape: f32[8,768], index: 5, kind: output, shape index: {}]
  %s6 = sld [smem:[#allocation0]]
  $region46: #{tpu_custom_call.1} parent=0
    _
  %s8 = ssub.s32 1, %s6
  %s9 = scalar_select 0, %s8, %s6
  $region1: #{tpu_custom_call.1} parent=0
    #allocation2 [shape = 'u8[4096]{0}', space=vmem, size = 0x1000, scoped, tag = 'input window, operand 0, single buffered']
    #allocation3 [shape = 's32[1]{0}', space=sflag, size = 0x4, scoped, tag = 'scoped memory for tpu_custom_call.1']
    #allocation4 [shape = 's32[1]{0}', space=sflag, size = 0x4, scoped, tag = 'scoped memory for tpu_custom_call.1']
    #allocation5 [shape = 'u8[65536]{0}', space=vmem, size = 0x10000, scoped, tag = 'input window, operand 1, single buffered']
    #allocation6 [shape = 's32[1]{0}', space=sflag, size = 0x4, scoped, tag = 'scoped memory for tpu_custom_call.1']
    #allocation7 [shape = 'u8[1024]{0}', space=vmem, size = 0x400, scoped, tag = 'input window, operand 2, single buffered']
    #allocation8 [shape = 'u8[786432]{0}', space=vmem, size = 0xc0000, scoped, tag = 'input window, operand 3, single buffered']
    #allocation9 [shape = 's32[1]{0}', space=sflag, size = 0x4, scoped, tag = 'scoped memory for tpu_custom_call.1']
    #allocation10 [shape = 'u8[24576]{0}', space=vmem, size = 0x6000, scoped, tag = 'output window, operand 0, single buffered']
    %10 = vsyncpa [#allocation3], 0
    %11 = vsyncpa [#allocation6], 0
    %12 = vsyncpa [#allocation9], 0
    %13 = vsyncpa [#allocation4], 0
    // Predicated region
    $region2: #{tpu_custom_call.1} parent=1 // pred_check
      _
    $region3: #{tpu_custom_call.1} parent=1 // pred_check_branch
      %15 = sbr.rel (0) target = $region5
    $region4: #{tpu_custom_call.1} parent=1 // pred_region
      %s17 = ssub.s32 128, 128
      %18 = vsyncadd [#allocation3], %s17
      %s20 = sshll.u32 [#allocation2], 4
      %s21 = int_to_ptr.vmem [resolvable:$true] %s20
      %23 = dma.hbm_to_vmem [thread:$0]  %s0, 128, %s21, [#allocation3]
    $region5: #{tpu_custom_call.1} parent=1 // pred_fallthru
      _
    // Predicated region
    $region6: #{tpu_custom_call.1} parent=1 // pred_check
      _
    $region7: #{tpu_custom_call.1} parent=1 // pred_check_branch
      %25 = sbr.rel (0) target = $region9
    $region8: #{tpu_custom_call.1} parent=1 // pred_region
      %s27 = ssub.s32 2048, 2048
      %28 = vsyncadd [#allocation6], %s27
      %s29 = sshll.u32 [#allocation5], 4
      %s30 = int_to_ptr.vmem [resolvable:$true] %s29
      %35 = dma.hbm_to_vmem [thread:$0]  %s1, 2048, %s30, [#allocation6], 256, 256, 16
    $region9: #{tpu_custom_call.1} parent=1 // pred_fallthru
      _
    // Predicated region
    $region10: #{tpu_custom_call.1} parent=1 // pred_check
      _
    $region11: #{tpu_custom_call.1} parent=1 // pred_check_branch
      %37 = sbr.rel (0) target = $region13
    $region12: #{tpu_custom_call.1} parent=1 // pred_region
      %s39 = ssub.s32 32, 32
      %40 = vsyncadd [#allocation6], %s39
      %s42 = sshll.u32 [#allocation7], 4
      %s43 = int_to_ptr.vmem [resolvable:$true] %s42
      %45 = dma.hbm_to_vmem [thread:$0]  %s2, 32, %s43, [#allocation6]
    $region13: #{tpu_custom_call.1} parent=1 // pred_fallthru
      _
    // Predicated region
    $region14: #{tpu_custom_call.1} parent=1 // pred_check
      _
    $region15: #{tpu_custom_call.1} parent=1 // pred_check_branch
      %47 = sbr.rel (0) target = $region17
    $region16: #{tpu_custom_call.1} parent=1 // pred_region
      %s49 = ssub.s32 24576, 24576
      %50 = vsyncadd [#allocation9], %s49
      %s51 = sshll.u32 [#allocation8], 4
      %s52 = int_to_ptr.vmem [resolvable:$true] %s51
      %57 = dma.hbm_to_vmem [thread:$0]  %s3, 24576, %s52, [#allocation9], 768, 768, 48
    $region17: #{tpu_custom_call.1} parent=1 // pred_fallthru
      _
    // Predicated region
    $region18: #{tpu_custom_call.1} parent=1 // pred_check
      _
    $region19: #{tpu_custom_call.1} parent=1 // pred_check_branch
      %59 = sbr.rel (0) target = $region21
    $region20: #{tpu_custom_call.1} parent=1 // pred_region
      _
    $region21: #{tpu_custom_call.1} parent=1 // pred_fallthru
      _
    // Predicated region
    $region22: #{tpu_custom_call.1} parent=1 // pred_check
      _
    $region23: #{tpu_custom_call.1} parent=1 // pred_check_branch
      %61 = sbr.rel (0) target = $region25
    $region24: #{tpu_custom_call.1} parent=1 // pred_region
      %62 = dma.done [#allocation3], 128
    $region25: #{tpu_custom_call.1} parent=1 // pred_fallthru
      _
    // Predicated region
    $region26: #{tpu_custom_call.1} parent=1 // pred_check
      _
    $region27: #{tpu_custom_call.1} parent=1 // pred_check_branch
      %64 = sbr.rel (0) target = $region29
    $region28: #{tpu_custom_call.1} parent=1 // pred_region
      %65 = dma.done [#allocation6], 2048
    $region29: #{tpu_custom_call.1} parent=1 // pred_fallthru
      _
    // Predicated region
    $region30: #{tpu_custom_call.1} parent=1 // pred_check
      _
    $region31: #{tpu_custom_call.1} parent=1 // pred_check_branch
      %67 = sbr.rel (0) target = $region33
    $region32: #{tpu_custom_call.1} parent=1 // pred_region
      %68 = dma.done [#allocation6], 32
    $region33: #{tpu_custom_call.1} parent=1 // pred_fallthru
      _
    // Predicated region
    $region34: #{tpu_custom_call.1} parent=1 // pred_check
      _
    $region35: #{tpu_custom_call.1} parent=1 // pred_check_branch
      %70 = sbr.rel (0) target = $region37
    $region36: #{tpu_custom_call.1} parent=1 // pred_region
      %71 = dma.done [#allocation9], 24576
    $region37: #{tpu_custom_call.1} parent=1 // pred_fallthru
      _
    %v72 = vld [vmem:[#allocation2] sm:$0xff]
    %v73 = vld [vmem:[#allocation5] sm:$0xff]
    %v74 = vld [vmem:[#allocation5 + $0x8] sm:$0xff]
    %v75 = vld [vmem:[#allocation5 + $0x10] sm:$0xff]
    %v76 = vld [vmem:[#allocation5 + $0x18] sm:$0xff]
    %v77 = vld [vmem:[#allocation5 + $0x20] sm:$0xff]
    %v78 = vld [vmem:[#allocation5 + $0x28] sm:$0xff]
    %v79 = vld [vmem:[#allocation5 + $0x30] sm:$0xff]
    %v80 = vld [vmem:[#allocation5 + $0x38] sm:$0xff]
    %v81 = vld [vmem:[#allocation5 + $0x40] sm:$0xff]
    %v82 = vld [vmem:[#allocation5 + $0x48] sm:$0xff]
    %v83 = vld [vmem:[#allocation5 + $0x50] sm:$0xff]
    %v84 = vld [vmem:[#allocation5 + $0x58] sm:$0xff]
    %v85 = vld [vmem:[#allocation5 + $0x60] sm:$0xff]
    %v86 = vld [vmem:[#allocation5 + $0x68] sm:$0xff]
    %v87 = vld [vmem:[#allocation5 + $0x70] sm:$0xff]
    %v88 = vld [vmem:[#allocation5 + $0x78] sm:$0xff]
    %v89 = vld [vmem:[#allocation7] sm:$0x3]
    %v91 = vlaneseq
    %v92 = vshrl.u32 %v91, 7
    %v93 = vsub.s32 0, %v92
    %v94 = vrot.slane %v89, %v93
    %v95 = vlaneseq
    %v96 = vshrl.u32 %v95, 7
    %v97 = vsub.s32 1, %v96
    %v98 = vrot.slane %v89, %v97
    %vm101 = vcmask 523264
    %v103 = vsel %vm101, %v72, 0
    %105 = vmatprep.subr.mxu0 0.0
    %106 = vmatpush1.msra.mxu0 0.0
    %107 = vmatprep.subr.mxu0 0.0
    %108 = vmatpush1.msra.mxu0 0.0
    %109 = vmatprep.subr.mxu0 0.0
    %110 = vmatpush1.msra.mxu0 0.0
    %111 = vmatprep.subr.mxu0 0.0
    %112 = vmatpush1.msra.mxu0 0.0
    %113 = vmatprep.subr.mxu0 0.0
    %114 = vmatpush1.msra.mxu0 0.0
    %115 = vmatprep.subr.mxu0 0.0
    %116 = vmatpush1.msra.mxu0 0.0
    %117 = vmatprep.subr.mxu0 0.0
    %118 = vmatpush1.msra.mxu0 0.0
    %119 = vmatprep.subr.mxu0 0.0
    %120 = vmatpush1.msra.mxu0 0.0
    %121 = vmatprep.subr.mxu0 %v88
    %122 = vmatpush1.msra.mxu0 %v87
    %123 = vmatprep.subr.mxu0 %v86
    %124 = vmatpush1.msra.mxu0 %v85
    %125 = vmatprep.subr.mxu0 %v84
    %126 = vmatpush1.msra.mxu0 %v83
    %127 = vmatprep.subr.mxu0 %v82
    %128 = vmatpush1.msra.mxu0 %v81
    %129 = vmatprep.subr.mxu0 %v80
    %130 = vmatpush1.msra.mxu0 %v79
    %131 = vmatprep.subr.mxu0 %v78
    %132 = vmatpush1.msra.mxu0 %v77
    %133 = vmatprep.subr.mxu0 %v76
    %134 = vmatpush1.msra.mxu0 %v75
    %135 = vmatprep.subr.mxu0 %v74
    %136 = vmatpush1.msra.mxu0 %v73
    %137 = vmatprep.subr.mxu0 0.0
    %138 = vmatpush2.msra.mxu0 0.0
    %139 = vmatprep.subr.mxu0 0.0
    %140 = vmatpush2.msra.mxu0 0.0
    %141 = vmatprep.subr.mxu0 0.0
    %142 = vmatpush2.msra.mxu0 0.0
    %143 = vmatprep.subr.mxu0 0.0
    %144 = vmatpush2.msra.mxu0 0.0
    %145 = vmatprep.subr.mxu0 0.0
    %146 = vmatpush2.msra.mxu0 0.0
    %147 = vmatprep.subr.mxu0 0.0
    %148 = vmatpush2.msra.mxu0 0.0
    %149 = vmatprep.subr.mxu0 0.0
    %150 = vmatpush2.msra.mxu0 0.0
    %151 = vmatprep.subr.mxu0 0.0
    %152 = vmatpush2.msra.mxu0 0.0
    %153 = vmatprep.subr.mxu0 0.0
    %154 = vmatpush2.msra.mxu0 0.0
    %155 = vmatprep.subr.mxu0 0.0
    %156 = vmatpush2.msra.mxu0 0.0
    %157 = vmatprep.subr.mxu0 0.0
    %158 = vmatpush2.msra.mxu0 0.0
    %159 = vmatprep.subr.mxu0 0.0
    %160 = vmatpush2.msra.mxu0 0.0
    %161 = vmatprep.subr.mxu0 0.0
    %162 = vmatpush2.msra.mxu0 0.0
    %163 = vmatprep.subr.mxu0 0.0
    %164 = vmatpush2.msra.mxu0 0.0
    %165 = vmatprep.subr.mxu0 0.0
    %166 = vmatpush2.msra.mxu0 0.0
    %167 = vmatprep.subr.mxu0 0.0
    %168 = vmatpush2.msra.mxu0 0.0
    %169 = vmatprep.mubr.f32.mxu0 0.0
    %170 = vmatmul.mubr.f32.gmra.mxu0 %v103
    %v171 = vpop.f32.mrf.mxu0
    %v172 = vadd.f32 %v94, %v171
    %v173 = vpop.f32.mrf.mxu0
    %v174 = vadd.f32 %v98, %v173
    %175 = vdwg.mxu0
    %v176 = vmax.f32 %v172, 0.0
    %v177 = vmax.f32 %v174, 0.0
    %v178 = vld [vmem:[#allocation8] sm:$0xff]
    %v179 = vld [vmem:[#allocation8 + $0x8] sm:$0xff]
    %v180 = vld [vmem:[#allocation8 + $0x10] sm:$0xff]
    %v181 = vld [vmem:[#allocation8 + $0x18] sm:$0xff]
    %v182 = vld [vmem:[#allocation8 + $0x20] sm:$0xff]
    %v183 = vld [vmem:[#allocation8 + $0x28] sm:$0xff]
    %v184 = vld [vmem:[#allocation8 + $0x30] sm:$0xff]
    %v185 = vld [vmem:[#allocation8 + $0x38] sm:$0xff]
    %v186 = vld [vmem:[#allocation8 + $0x40] sm:$0xff]
    %v187 = vld [vmem:[#allocation8 + $0x48] sm:$0xff]
    %v188 = vld [vmem:[#allocation8 + $0x50] sm:$0xff]
    %v189 = vld [vmem:[#allocation8 + $0x58] sm:$0xff]
    %v190 = vld [vmem:[#allocation8 + $0x60] sm:$0xff]
    %v191 = vld [vmem:[#allocation8 + $0x68] sm:$0xff]
    %v192 = vld [vmem:[#allocation8 + $0x70] sm:$0xff]
    %v193 = vld [vmem:[#allocation8 + $0x78] sm:$0xff]
    %v194 = vld [vmem:[#allocation8 + $0x80] sm:$0xff]
    %v195 = vld [vmem:[#allocation8 + $0x88] sm:$0xff]
    %v196 = vld [vmem:[#allocation8 + $0x90] sm:$0xff]
    %v197 = vld [vmem:[#allocation8 + $0x98] sm:$0xff]
    %v198 = vld [vmem:[#allocation8 + $0xa0] sm:$0xff]
    %v199 = vld [vmem:[#allocation8 + $0xa8] sm:$0xff]
    %v200 = vld [vmem:[#allocation8 + $0xb0] sm:$0xff]
    %v201 = vld [vmem:[#allocation8 + $0xb8] sm:$0xff]
    %v202 = vld [vmem:[#allocation8 + $0xc0] sm:$0xff]
    %v203 = vld [vmem:[#allocation8 + $0xc8] sm:$0xff]
    %v204 = vld [vmem:[#allocation8 + $0xd0] sm:$0xff]
    %v205 = vld [vmem:[#allocation8 + $0xd8] sm:$0xff]
    %v206 = vld [vmem:[#allocation8 + $0xe0] sm:$0xff]
    %v207 = vld [vmem:[#allocation8 + $0xe8] sm:$0xff]
    %v208 = vld [vmem:[#allocation8 + $0xf0] sm:$0xff]
    %v209 = vld [vmem:[#allocation8 + $0xf8] sm:$0xff]
    %v210 = vld [vmem:[#allocation8 + $0x100] sm:$0xff]
    %v211 = vld [vmem:[#allocation8 + $0x108] sm:$0xff]
    %v212 = vld [vmem:[#allocation8 + $0x110] sm:$0xff]
    %v213 = vld [vmem:[#allocation8 + $0x118] sm:$0xff]
    %v214 = vld [vmem:[#allocation8 + $0x120] sm:$0xff]
    %v215 = vld [vmem:[#allocation8 + $0x128] sm:$0xff]
    %v216 = vld [vmem:[#allocation8 + $0x130] sm:$0xff]
    %v217 = vld [vmem:[#allocation8 + $0x138] sm:$0xff]
    %v218 = vld [vmem:[#allocation8 + $0x140] sm:$0xff]
    %v219 = vld [vmem:[#allocation8 + $0x148] sm:$0xff]
    %v220 = vld [vmem:[#allocation8 + $0x150] sm:$0xff]
    %v221 = vld [vmem:[#allocation8 + $0x158] sm:$0xff]
    %v222 = vld [vmem:[#allocation8 + $0x160] sm:$0xff]
    %v223 = vld [vmem:[#allocation8 + $0x168] sm:$0xff]
    %v224 = vld [vmem:[#allocation8 + $0x170] sm:$0xff]
    %v225 = vld [vmem:[#allocation8 + $0x178] sm:$0xff]
    %v226 = vld [vmem:[#allocation8 + $0x180] sm:$0xff]
    %v227 = vld [vmem:[#allocation8 + $0x188] sm:$0xff]
    %v228 = vld [vmem:[#allocation8 + $0x190] sm:$0xff]
    %v229 = vld [vmem:[#allocation8 + $0x198] sm:$0xff]
    %v230 = vld [vmem:[#allocation8 + $0x1a0] sm:$0xff]
    %v231 = vld [vmem:[#allocation8 + $0x1a8] sm:$0xff]
    %v232 = vld [vmem:[#allocation8 + $0x1b0] sm:$0xff]
    %v233 = vld [vmem:[#allocation8 + $0x1b8] sm:$0xff]
    %v234 = vld [vmem:[#allocation8 + $0x1c0] sm:$0xff]
    %v235 = vld [vmem:[#allocation8 + $0x1c8] sm:$0xff]
    %v236 = vld [vmem:[#allocation8 + $0x1d0] sm:$0xff]
    %v237 = vld [vmem:[#allocation8 + $0x1d8] sm:$0xff]
    %v238 = vld [vmem:[#allocation8 + $0x1e0] sm:$0xff]
    %v239 = vld [vmem:[#allocation8 + $0x1e8] sm:$0xff]
    %v240 = vld [vmem:[#allocation8 + $0x1f0] sm:$0xff]
    %v241 = vld [vmem:[#allocation8 + $0x1f8] sm:$0xff]
    %v242 = vld [vmem:[#allocation8 + $0x200] sm:$0xff]
    %v243 = vld [vmem:[#allocation8 + $0x208] sm:$0xff]
    %v244 = vld [vmem:[#allocation8 + $0x210] sm:$0xff]
    %v245 = vld [vmem:[#allocation8 + $0x218] sm:$0xff]
    %v246 = vld [vmem:[#allocation8 + $0x220] sm:$0xff]
    %v247 = vld [vmem:[#allocation8 + $0x228] sm:$0xff]
    %v248 = vld [vmem:[#allocation8 + $0x230] sm:$0xff]
    %v249 = vld [vmem:[#allocation8 + $0x238] sm:$0xff]
    %v250 = vld [vmem:[#allocation8 + $0x240] sm:$0xff]
    %v251 = vld [vmem:[#allocation8 + $0x248] sm:$0xff]
    %v252 = vld [vmem:[#allocation8 + $0x250] sm:$0xff]
    %v253 = vld [vmem:[#allocation8 + $0x258] sm:$0xff]
    %v254 = vld [vmem:[#allocation8 + $0x260] sm:$0xff]
    %v255 = vld [vmem:[#allocation8 + $0x268] sm:$0xff]
    %v256 = vld [vmem:[#allocation8 + $0x270] sm:$0xff]
    %v257 = vld [vmem:[#allocation8 + $0x278] sm:$0xff]
    %v258 = vld [vmem:[#allocation8 + $0x280] sm:$0xff]
    %v259 = vld [vmem:[#allocation8 + $0x288] sm:$0xff]
    %v260 = vld [vmem:[#allocation8 + $0x290] sm:$0xff]
    %v261 = vld [vmem:[#allocation8 + $0x298] sm:$0xff]
    %v262 = vld [vmem:[#allocation8 + $0x2a0] sm:$0xff]
    %v263 = vld [vmem:[#allocation8 + $0x2a8] sm:$0xff]
    %v264 = vld [vmem:[#allocation8 + $0x2b0] sm:$0xff]
    %v265 = vld [vmem:[#allocation8 + $0x2b8] sm:$0xff]
    %v266 = vld [vmem:[#allocation8 + $0x2c0] sm:$0xff]
    %v267 = vld [vmem:[#allocation8 + $0x2c8] sm:$0xff]
    %v268 = vld [vmem:[#allocation8 + $0x2d0] sm:$0xff]
    %v269 = vld [vmem:[#allocation8 + $0x2d8] sm:$0xff]
    %v270 = vld [vmem:[#allocation8 + $0x2e0] sm:$0xff]
    %v271 = vld [vmem:[#allocation8 + $0x2e8] sm:$0xff]
    %v272 = vld [vmem:[#allocation8 + $0x2f0] sm:$0xff]
    %v273 = vld [vmem:[#allocation8 + $0x2f8] sm:$0xff]
    %v274 = vld [vmem:[#allocation8 + $0x300] sm:$0xff]
    %v275 = vld [vmem:[#allocation8 + $0x308] sm:$0xff]
    %v276 = vld [vmem:[#allocation8 + $0x310] sm:$0xff]
    %v277 = vld [vmem:[#allocation8 + $0x318] sm:$0xff]
    %v278 = vld [vmem:[#allocation8 + $0x320] sm:$0xff]
    %v279 = vld [vmem:[#allocation8 + $0x328] sm:$0xff]
    %v280 = vld [vmem:[#allocation8 + $0x330] sm:$0xff]
    %v281 = vld [vmem:[#allocation8 + $0x338] sm:$0xff]
    %v282 = vld [vmem:[#allocation8 + $0x340] sm:$0xff]
    %v283 = vld [vmem:[#allocation8 + $0x348] sm:$0xff]
    %v284 = vld [vmem:[#allocation8 + $0x350] sm:$0xff]
    %v285 = vld [vmem:[#allocation8 + $0x358] sm:$0xff]
    %v286 = vld [vmem:[#allocation8 + $0x360] sm:$0xff]
    %v287 = vld [vmem:[#allocation8 + $0x368] sm:$0xff]
    %v288 = vld [vmem:[#allocation8 + $0x370] sm:$0xff]
    %v289 = vld [vmem:[#allocation8 + $0x378] sm:$0xff]
    %v290 = vld [vmem:[#allocation8 + $0x380] sm:$0xff]
    %v291 = vld [vmem:[#allocation8 + $0x388] sm:$0xff]
    %v292 = vld [vmem:[#allocation8 + $0x390] sm:$0xff]
    %v293 = vld [vmem:[#allocation8 + $0x398] sm:$0xff]
    %v294 = vld [vmem:[#allocation8 + $0x3a0] sm:$0xff]
    %v295 = vld [vmem:[#allocation8 + $0x3a8] sm:$0xff]
    %v296 = vld [vmem:[#allocation8 + $0x3b0] sm:$0xff]
    %v297 = vld [vmem:[#allocation8 + $0x3b8] sm:$0xff]
    %v298 = vld [vmem:[#allocation8 + $0x3c0] sm:$0xff]
    %v299 = vld [vmem:[#allocation8 + $0x3c8] sm:$0xff]
    %v300 = vld [vmem:[#allocation8 + $0x3d0] sm:$0xff]
    %v301 = vld [vmem:[#allocation8 + $0x3d8] sm:$0xff]
    %v302 = vld [vmem:[#allocation8 + $0x3e0] sm:$0xff]
    %v303 = vld [vmem:[#allocation8 + $0x3e8] sm:$0xff]
    %v304 = vld [vmem:[#allocation8 + $0x3f0] sm:$0xff]
    %v305 = vld [vmem:[#allocation8 + $0x3f8] sm:$0xff]
    %v306 = vld [vmem:[#allocation8 + $0x400] sm:$0xff]
    %v307 = vld [vmem:[#allocation8 + $0x408] sm:$0xff]
    %v308 = vld [vmem:[#allocation8 + $0x410] sm:$0xff]
    %v309 = vld [vmem:[#allocation8 + $0x418] sm:$0xff]
    %v310 = vld [vmem:[#allocation8 + $0x420] sm:$0xff]
    %v311 = vld [vmem:[#allocation8 + $0x428] sm:$0xff]
    %v312 = vld [vmem:[#allocation8 + $0x430] sm:$0xff]
    %v313 = vld [vmem:[#allocation8 + $0x438] sm:$0xff]
    %v314 = vld [vmem:[#allocation8 + $0x440] sm:$0xff]
    %v315 = vld [vmem:[#allocation8 + $0x448] sm:$0xff]
    %v316 = vld [vmem:[#allocation8 + $0x450] sm:$0xff]
    %v317 = vld [vmem:[#allocation8 + $0x458] sm:$0xff]
    %v318 = vld [vmem:[#allocation8 + $0x460] sm:$0xff]
    %v319 = vld [vmem:[#allocation8 + $0x468] sm:$0xff]
    %v320 = vld [vmem:[#allocation8 + $0x470] sm:$0xff]
    %v321 = vld [vmem:[#allocation8 + $0x478] sm:$0xff]
    %v322 = vld [vmem:[#allocation8 + $0x480] sm:$0xff]
    %v323 = vld [vmem:[#allocation8 + $0x488] sm:$0xff]
    %v324 = vld [vmem:[#allocation8 + $0x490] sm:$0xff]
    %v325 = vld [vmem:[#allocation8 + $0x498] sm:$0xff]
    %v326 = vld [vmem:[#allocation8 + $0x4a0] sm:$0xff]
    %v327 = vld [vmem:[#allocation8 + $0x4a8] sm:$0xff]
    %v328 = vld [vmem:[#allocation8 + $0x4b0] sm:$0xff]
    %v329 = vld [vmem:[#allocation8 + $0x4b8] sm:$0xff]
    %v330 = vld [vmem:[#allocation8 + $0x4c0] sm:$0xff]
    %v331 = vld [vmem:[#allocation8 + $0x4c8] sm:$0xff]
    %v332 = vld [vmem:[#allocation8 + $0x4d0] sm:$0xff]
    %v333 = vld [vmem:[#allocation8 + $0x4d8] sm:$0xff]
    %v334 = vld [vmem:[#allocation8 + $0x4e0] sm:$0xff]
    %v335 = vld [vmem:[#allocation8 + $0x4e8] sm:$0xff]
    %v336 = vld [vmem:[#allocation8 + $0x4f0] sm:$0xff]
    %v337 = vld [vmem:[#allocation8 + $0x4f8] sm:$0xff]
    %v338 = vld [vmem:[#allocation8 + $0x500] sm:$0xff]
    %v339 = vld [vmem:[#allocation8 + $0x508] sm:$0xff]
    %v340 = vld [vmem:[#allocation8 + $0x510] sm:$0xff]
    %v341 = vld [vmem:[#allocation8 + $0x518] sm:$0xff]
    %v342 = vld [vmem:[#allocation8 + $0x520] sm:$0xff]
    %v343 = vld [vmem:[#allocation8 + $0x528] sm:$0xff]
    %v344 = vld [vmem:[#allocation8 + $0x530] sm:$0xff]
    %v345 = vld [vmem:[#allocation8 + $0x538] sm:$0xff]
    %v346 = vld [vmem:[#allocation8 + $0x540] sm:$0xff]
    %v347 = vld [vmem:[#allocation8 + $0x548] sm:$0xff]
    %v348 = vld [vmem:[#allocation8 + $0x550] sm:$0xff]
    %v349 = vld [vmem:[#allocation8 + $0x558] sm:$0xff]
    %v350 = vld [vmem:[#allocation8 + $0x560] sm:$0xff]
    %v351 = vld [vmem:[#allocation8 + $0x568] sm:$0xff]
    %v352 = vld [vmem:[#allocation8 + $0x570] sm:$0xff]
    %v353 = vld [vmem:[#allocation8 + $0x578] sm:$0xff]
    %v354 = vld [vmem:[#allocation8 + $0x580] sm:$0xff]
    %v355 = vld [vmem:[#allocation8 + $0x588] sm:$0xff]
    %v356 = vld [vmem:[#allocation8 + $0x590] sm:$0xff]
    %v357 = vld [vmem:[#allocation8 + $0x598] sm:$0xff]
    %v358 = vld [vmem:[#allocation8 + $0x5a0] sm:$0xff]
    %v359 = vld [vmem:[#allocation8 + $0x5a8] sm:$0xff]
    %v360 = vld [vmem:[#allocation8 + $0x5b0] sm:$0xff]
    %v361 = vld [vmem:[#allocation8 + $0x5b8] sm:$0xff]
    %v362 = vld [vmem:[#allocation8 + $0x5c0] sm:$0xff]
    %v363 = vld [vmem:[#allocation8 + $0x5c8] sm:$0xff]
    %v364 = vld [vmem:[#allocation8 + $0x5d0] sm:$0xff]
    %v365 = vld [vmem:[#allocation8 + $0x5d8] sm:$0xff]
    %v366 = vld [vmem:[#allocation8 + $0x5e0] sm:$0xff]
    %v367 = vld [vmem:[#allocation8 + $0x5e8] sm:$0xff]
    %v368 = vld [vmem:[#allocation8 + $0x5f0] sm:$0xff]
    %v369 = vld [vmem:[#allocation8 + $0x5f8] sm:$0xff]
    %v370 = vld [vmem:[%s4] sm:$0x3f]
    %v372 = vlaneseq
    %v373 = vshrl.u32 %v372, 7
    %v374 = vsub.s32 0, %v373
    %v375 = vrot.slane %v370, %v374
    %v376 = vlaneseq
    %v377 = vshrl.u32 %v376, 7
    %v378 = vsub.s32 1, %v377
    %v379 = vrot.slane %v370, %v378
    %v380 = vlaneseq
    %v381 = vshrl.u32 %v380, 7
    %v382 = vsub.s32 2, %v381
    %v383 = vrot.slane %v370, %v382
    %v384 = vlaneseq
    %v385 = vshrl.u32 %v384, 7
    %v386 = vsub.s32 3, %v385
    %v387 = vrot.slane %v370, %v386
    %v388 = vlaneseq
    %v389 = vshrl.u32 %v388, 7
    %v390 = vsub.s32 4, %v389
    %v391 = vrot.slane %v370, %v390
    %v392 = vlaneseq
    %v393 = vshrl.u32 %v392, 7
    %v394 = vsub.s32 5, %v393
    %v395 = vrot.slane %v370, %v394
    %402 = vmatprep.subr.mxu0 %v269
    %403 = vmatpush1.msra.mxu0 %v268
    %404 = vmatprep.subr.mxu0 %v263
    %405 = vmatpush1.msra.mxu0 %v262
    %406 = vmatprep.subr.mxu0 %v257
    %407 = vmatpush1.msra.mxu0 %v256
    %408 = vmatprep.subr.mxu0 %v251
    %409 = vmatpush1.msra.mxu0 %v250
    %410 = vmatprep.subr.mxu0 %v245
    %411 = vmatpush1.msra.mxu0 %v244
    %412 = vmatprep.subr.mxu0 %v239
    %413 = vmatpush1.msra.mxu0 %v238
    %414 = vmatprep.subr.mxu0 %v233
    %415 = vmatpush1.msra.mxu0 %v232
    %416 = vmatprep.subr.mxu0 %v227
    %417 = vmatpush1.msra.mxu0 %v226
    %418 = vmatprep.subr.mxu0 %v221
    %419 = vmatpush1.msra.mxu0 %v220
    %420 = vmatprep.subr.mxu0 %v215
    %421 = vmatpush1.msra.mxu0 %v214
    %422 = vmatprep.subr.mxu0 %v209
    %423 = vmatpush1.msra.mxu0 %v208
    %424 = vmatprep.subr.mxu0 %v203
    %425 = vmatpush1.msra.mxu0 %v202
    %426 = vmatprep.subr.mxu0 %v197
    %427 = vmatpush1.msra.mxu0 %v196
    %428 = vmatprep.subr.mxu0 %v191
    %429 = vmatpush1.msra.mxu0 %v190
    %430 = vmatprep.subr.mxu0 %v185
    %431 = vmatpush1.msra.mxu0 %v184
    %432 = vmatprep.subr.mxu0 %v179
    %433 = vmatpush1.msra.mxu0 %v178
    %434 = vmatprep.subr.mxu0 %v365
    %435 = vmatpush2.msra.mxu0 %v364
    %436 = vmatprep.subr.mxu0 %v359
    %437 = vmatpush2.msra.mxu0 %v358
    %438 = vmatprep.subr.mxu0 %v353
    %439 = vmatpush2.msra.mxu0 %v352
    %440 = vmatprep.subr.mxu0 %v347
    %441 = vmatpush2.msra.mxu0 %v346
    %442 = vmatprep.subr.mxu0 %v341
    %443 = vmatpush2.msra.mxu0 %v340
    %444 = vmatprep.subr.mxu0 %v335
    %445 = vmatpush2.msra.mxu0 %v334
    %446 = vmatprep.subr.mxu0 %v329
    %447 = vmatpush2.msra.mxu0 %v328
    %448 = vmatprep.subr.mxu0 %v323
    %449 = vmatpush2.msra.mxu0 %v322
    %450 = vmatprep.subr.mxu0 %v317
    %451 = vmatpush2.msra.mxu0 %v316
    %452 = vmatprep.subr.mxu0 %v311
    %453 = vmatpush2.msra.mxu0 %v310
    %454 = vmatprep.subr.mxu0 %v305
    %455 = vmatpush2.msra.mxu0 %v304
    %456 = vmatprep.subr.mxu0 %v299
    %457 = vmatpush2.msra.mxu0 %v298
    %458 = vmatprep.subr.mxu0 %v293
    %459 = vmatpush2.msra.mxu0 %v292
    %460 = vmatprep.subr.mxu0 %v287
    %461 = vmatpush2.msra.mxu0 %v286
    %462 = vmatprep.subr.mxu0 %v281
    %463 = vmatpush2.msra.mxu0 %v280
    %464 = vmatprep.subr.mxu0 %v275
    %465 = vmatpush2.msra.mxu0 %v274
    %466 = vmatprep.mubr.f32.mxu0 %v177
    %467 = vmatmul.mubr.f32.gmra.mxu0 %v176
    %v468 = vpop.f32.mrf.mxu0
    %v469 = vadd.f32 %v375, %v468
    %v470 = vpop.f32.mrf.mxu0
    %v471 = vadd.f32 %v379, %v470
    %472 = vdwg.mxu0
    %473 = vmatprep.subr.mxu0 %v271
    %474 = vmatpush1.msra.mxu0 %v270
    %475 = vmatprep.subr.mxu0 %v265
    %476 = vmatpush1.msra.mxu0 %v264
    %477 = vmatprep.subr.mxu0 %v259
    %478 = vmatpush1.msra.mxu0 %v258
    %479 = vmatprep.subr.mxu0 %v253
    %480 = vmatpush1.msra.mxu0 %v252
    %481 = vmatprep.subr.mxu0 %v247
    %482 = vmatpush1.msra.mxu0 %v246
    %483 = vmatprep.subr.mxu0 %v241
    %484 = vmatpush1.msra.mxu0 %v240
    %485 = vmatprep.subr.mxu0 %v235
    %486 = vmatpush1.msra.mxu0 %v234
    %487 = vmatprep.subr.mxu0 %v229
    %488 = vmatpush1.msra.mxu0 %v228
    %489 = vmatprep.subr.mxu0 %v223
    %490 = vmatpush1.msra.mxu0 %v222
    %491 = vmatprep.subr.mxu0 %v217
    %492 = vmatpush1.msra.mxu0 %v216
    %493 = vmatprep.subr.mxu0 %v211
    %494 = vmatpush1.msra.mxu0 %v210
    %495 = vmatprep.subr.mxu0 %v205
    %496 = vmatpush1.msra.mxu0 %v204
    %497 = vmatprep.subr.mxu0 %v199
    %498 = vmatpush1.msra.mxu0 %v198
    %499 = vmatprep.subr.mxu0 %v193
    %500 = vmatpush1.msra.mxu0 %v192
    %501 = vmatprep.subr.mxu0 %v187
    %502 = vmatpush1.msra.mxu0 %v186
    %503 = vmatprep.subr.mxu0 %v181
    %504 = vmatpush1.msra.mxu0 %v180
    %505 = vmatprep.subr.mxu0 %v367
    %506 = vmatpush2.msra.mxu0 %v366
    %507 = vmatprep.subr.mxu0 %v361
    %508 = vmatpush2.msra.mxu0 %v360
    %509 = vmatprep.subr.mxu0 %v355
    %510 = vmatpush2.msra.mxu0 %v354
    %511 = vmatprep.subr.mxu0 %v349
    %512 = vmatpush2.msra.mxu0 %v348
    %513 = vmatprep.subr.mxu0 %v343
    %514 = vmatpush2.msra.mxu0 %v342
    %515 = vmatprep.subr.mxu0 %v337
    %516 = vmatpush2.msra.mxu0 %v336
    %517 = vmatprep.subr.mxu0 %v331
    %518 = vmatpush2.msra.mxu0 %v330
    %519 = vmatprep.subr.mxu0 %v325
    %520 = vmatpush2.msra.mxu0 %v324
    %521 = vmatprep.subr.mxu0 %v319
    %522 = vmatpush2.msra.mxu0 %v318
    %523 = vmatprep.subr.mxu0 %v313
    %524 = vmatpush2.msra.mxu0 %v312
    %525 = vmatprep.subr.mxu0 %v307
    %526 = vmatpush2.msra.mxu0 %v306
    %527 = vmatprep.subr.mxu0 %v301
    %528 = vmatpush2.msra.mxu0 %v300
    %529 = vmatprep.subr.mxu0 %v295
    %530 = vmatpush2.msra.mxu0 %v294
    %531 = vmatprep.subr.mxu0 %v289
    %532 = vmatpush2.msra.mxu0 %v288
    %533 = vmatprep.subr.mxu0 %v283
    %534 = vmatpush2.msra.mxu0 %v282
    %535 = vmatprep.subr.mxu0 %v277
    %536 = vmatpush2.msra.mxu0 %v276
    %537 = vmatprep.mubr.f32.mxu0 %v177
    %538 = vmatmul.mubr.f32.gmra.mxu0 %v176
    %v539 = vpop.f32.mrf.mxu0
    %v540 = vadd.f32 %v383, %v539
    %v541 = vpop.f32.mrf.mxu0
    %v542 = vadd.f32 %v387, %v541
    %543 = vdwg.mxu0
    %544 = vmatprep.subr.mxu0 %v273
    %545 = vmatpush1.msra.mxu0 %v272
    %546 = vmatprep.subr.mxu0 %v267
    %547 = vmatpush1.msra.mxu0 %v266
    %548 = vmatprep.subr.mxu0 %v261
    %549 = vmatpush1.msra.mxu0 %v260
    %550 = vmatprep.subr.mxu0 %v255
    %551 = vmatpush1.msra.mxu0 %v254
    %552 = vmatprep.subr.mxu0 %v249
    %553 = vmatpush1.msra.mxu0 %v248
    %554 = vmatprep.subr.mxu0 %v243
    %555 = vmatpush1.msra.mxu0 %v242
    %556 = vmatprep.subr.mxu0 %v237
    %557 = vmatpush1.msra.mxu0 %v236
    %558 = vmatprep.subr.mxu0 %v231
    %559 = vmatpush1.msra.mxu0 %v230
    %560 = vmatprep.subr.mxu0 %v225
    %561 = vmatpush1.msra.mxu0 %v224
    %562 = vmatprep.subr.mxu0 %v219
    %563 = vmatpush1.msra.mxu0 %v218
    %564 = vmatprep.subr.mxu0 %v213
    %565 = vmatpush1.msra.mxu0 %v212
    %566 = vmatprep.subr.mxu0 %v207
    %567 = vmatpush1.msra.mxu0 %v206
    %568 = vmatprep.subr.mxu0 %v201
    %569 = vmatpush1.msra.mxu0 %v200
    %570 = vmatprep.subr.mxu0 %v195
    %571 = vmatpush1.msra.mxu0 %v194
    %572 = vmatprep.subr.mxu0 %v189
    %573 = vmatpush1.msra.mxu0 %v188
    %574 = vmatprep.subr.mxu0 %v183
    %575 = vmatpush1.msra.mxu0 %v182
    %576 = vmatprep.subr.mxu0 %v369
    %577 = vmatpush2.msra.mxu0 %v368
    %578 = vmatprep.subr.mxu0 %v363
    %579 = vmatpush2.msra.mxu0 %v362
    %580 = vmatprep.subr.mxu0 %v357
    %581 = vmatpush2.msra.mxu0 %v356
    %582 = vmatprep.subr.mxu0 %v351
    %583 = vmatpush2.msra.mxu0 %v350
    %584 = vmatprep.subr.mxu0 %v345
    %585 = vmatpush2.msra.mxu0 %v344
    %586 = vmatprep.subr.mxu0 %v339
    %587 = vmatpush2.msra.mxu0 %v338
    %588 = vmatprep.subr.mxu0 %v333
    %589 = vmatpush2.msra.mxu0 %v332
    %590 = vmatprep.subr.mxu0 %v327
    %591 = vmatpush2.msra.mxu0 %v326
    %592 = vmatprep.subr.mxu0 %v321
    %593 = vmatpush2.msra.mxu0 %v320
    %594 = vmatprep.subr.mxu0 %v315
    %595 = vmatpush2.msra.mxu0 %v314
    %596 = vmatprep.subr.mxu0 %v309
    %597 = vmatpush2.msra.mxu0 %v308
    %598 = vmatprep.subr.mxu0 %v303
    %599 = vmatpush2.msra.mxu0 %v302
    %600 = vmatprep.subr.mxu0 %v297
    %601 = vmatpush2.msra.mxu0 %v296
    %602 = vmatprep.subr.mxu0 %v291
    %603 = vmatpush2.msra.mxu0 %v290
    %604 = vmatprep.subr.mxu0 %v285
    %605 = vmatpush2.msra.mxu0 %v284
    %606 = vmatprep.subr.mxu0 %v279
    %607 = vmatpush2.msra.mxu0 %v278
    %608 = vmatprep.mubr.f32.mxu0 %v177
    %609 = vmatmul.mubr.f32.gmra.mxu0 %v176
    %v610 = vpop.f32.mrf.mxu0
    %v611 = vadd.f32 %v391, %v610
    %v612 = vpop.f32.mrf.mxu0
    %v613 = vadd.f32 %v395, %v612
    %614 = vdwg.mxu0
    %615 = vmax.xlane.f32.xlu0 %v469
    %v616 = vpop.xlane.xlu0 %615
    %v617 = vsub.f32 %v469, %v616
    %v618 = vmul.f32 %v617, 1.442695
    %v619 = vpow.pop %v618
    %620 = vadd.xlane.f32.xlu0 %v619
    %v621 = vpop.xlane.xlu0 %620
    %v622 = vrcp.pop %v621
    %v623 = vmul.f32 %v619, %v622
    %624 = vst [vmem:[#allocation10] sm:$0xff] %v623
    %625 = vmax.xlane.f32.xlu0 %v471
    %v626 = vpop.xlane.xlu0 %625
    %v627 = vsub.f32 %v471, %v626
    %v628 = vmul.f32 %v627, 1.442695
    %v629 = vpow.pop %v628
    %630 = vadd.xlane.f32.xlu0 %v629
    %v631 = vpop.xlane.xlu0 %630
    %v632 = vrcp.pop %v631
    %v633 = vmul.f32 %v629, %v632
    %634 = vst [vmem:[#allocation10 + $0x8] sm:$0xff] %v633
    %635 = vmax.xlane.f32.xlu0 %v540
    %v636 = vpop.xlane.xlu0 %635
    %v637 = vsub.f32 %v540, %v636
    %v638 = vmul.f32 %v637, 1.442695
    %v639 = vpow.pop %v638
    %640 = vadd.xlane.f32.xlu0 %v639
    %v641 = vpop.xlane.xlu0 %640
    %v642 = vrcp.pop %v641
    %v643 = vmul.f32 %v639, %v642
    %644 = vst [vmem:[#allocation10 + $0x10] sm:$0xff] %v643
    %645 = vmax.xlane.f32.xlu0 %v542
    %v646 = vpop.xlane.xlu0 %645
    %v647 = vsub.f32 %v542, %v646
    %v648 = vmul.f32 %v647, 1.442695
    %v649 = vpow.pop %v648
    %650 = vadd.xlane.f32.xlu0 %v649
    %v651 = vpop.xlane.xlu0 %650
    %v652 = vrcp.pop %v651
    %v653 = vmul.f32 %v649, %v652
    %654 = vst [vmem:[#allocation10 + $0x18] sm:$0xff] %v653
    %655 = vmax.xlane.f32.xlu0 %v611
    %v656 = vpop.xlane.xlu0 %655
    %v657 = vsub.f32 %v611, %v656
    %v658 = vmul.f32 %v657, 1.442695
    %v659 = vpow.pop %v658
    %660 = vadd.xlane.f32.xlu0 %v659
    %v661 = vpop.xlane.xlu0 %660
    %v662 = vrcp.pop %v661
    %v663 = vmul.f32 %v659, %v662
    %664 = vst [vmem:[#allocation10 + $0x20] sm:$0xff] %v663
    %665 = vmax.xlane.f32.xlu0 %v613
    %v666 = vpop.xlane.xlu0 %665
    %v667 = vsub.f32 %v613, %v666
    %v668 = vmul.f32 %v667, 1.442695
    %v669 = vpow.pop %v668
    %670 = vadd.xlane.f32.xlu0 %v669
    %v671 = vpop.xlane.xlu0 %670
    %v672 = vrcp.pop %v671
    %v673 = vmul.f32 %v669, %v672
    %674 = vst [vmem:[#allocation10 + $0x28] sm:$0xff] %v673
    // Predicated region
    $region38: #{tpu_custom_call.1} parent=1 // pred_check
      _
    $region39: #{tpu_custom_call.1} parent=1 // pred_check_branch
      %676 = sbr.rel (0) target = $region41
    $region40: #{tpu_custom_call.1} parent=1 // pred_region
      %s678 = ssub.s32 768, 768
      %679 = vsyncadd [#allocation4], %s678
      %s681 = sshll.u32 [#allocation10], 4
      %s682 = int_to_ptr.vmem [resolvable:$true] %s681
      %684 = dma.vmem_to_hbm [thread:$0]  %s682, 768, %s5, [#allocation4]
    $region41: #{tpu_custom_call.1} parent=1 // pred_fallthru
      _
    // Predicated region
    $region42: #{tpu_custom_call.1} parent=1 // pred_check
      _
    $region43: #{tpu_custom_call.1} parent=1 // pred_check_branch
      %686 = sbr.rel (0) target = $region45
    $region44: #{tpu_custom_call.1} parent=1 // pred_region
      %687 = dma.done [#allocation4], 768
    $region45: #{tpu_custom_call.1} parent=1 // pred_fallthru
      _
    %688 = vsyncpa [#allocation3], 1
    %689 = vsyncpa [#allocation6], 1
    %690 = vsyncpa [#allocation9], 1
    %691 = vsyncpa [#allocation4], 1

</llo_original>
